<compile_context>
chip_gen: v7x
topology: tpu7x:2x2x1
jax: 0.10.0
libtpu: 0.0.40
codegen_flags: <defaults>
</compile_context>

<pallas_src>
import functools

import jax
import jax.numpy as jnp
from jax import lax
from jax.experimental import pallas as pl
from jax.experimental.pallas import tpu as pltpu
import numpy as np

_LANE = 128
_SUBLANE = 8


def _round_up(x, m):
    return ((x + m - 1) // m) * m


def tanh_normal_layer_kernel(x_ref, w_ref, b_ref, out_ref, *, mp):
    """One fused matmul; std half gets clamp(-20,2)+exp via a lane mask.

    x_ref:   [tile_B, Np]      (activations, f32 or bf16)
    w_ref:   [Np, 2*Mp]        (packed [mean head | std head], VMEM-resident)
    b_ref:   [1, 2*Mp]         (packed bias, f32, VMEM-resident)
    out_ref: [tile_B, 2*Mp]    (f32; cols [0,Mp) = mean, [Mp,2Mp) = std)
    """
    y = jnp.dot(x_ref[...], w_ref[...], preferred_element_type=jnp.float32)
    y = y + b_ref[...]
    col = lax.broadcasted_iota(jnp.int32, y.shape, dimension=1)
    is_std = col >= mp
    std = jnp.exp(jnp.clip(y, -20.0, 2.0))
    out_ref[...] = jnp.where(is_std, std, y).astype(out_ref.dtype)


def tanh_normal_layer(x, w_mean, b_mean, w_std, b_std,
                      *, tile_b=256, compute_dtype=None):
    """Pallas TanhNormalLayer forward.

    x: [B, N]; w_*: [N, M]; b_*: [1, M] (weights stored transposed relative
    to nn.Linear so the kernel does x @ W). Returns (mean, std), each [B, M].
    compute_dtype: optional dtype (e.g. jnp.bfloat16) for x / weights; the
    MXU still accumulates in f32 and outputs are f32.
    """
    B, N = x.shape
    M = w_mean.shape[1]

    Mp = _round_up(M, _LANE)          # per-head lane-aligned width
    P = 2 * Mp                        # fused output width
    Np = _round_up(N, _LANE)          # lane-aligned K dim

    w_dtype = compute_dtype if compute_dtype is not None else w_mean.dtype
    x_dtype = compute_dtype if compute_dtype is not None else x.dtype

    # Pack + zero-pad the two heads into one [Np, P] weight and [1, P] bias.
    w_cat = jnp.zeros((Np, P), w_dtype)
    w_cat = w_cat.at[:N, :M].set(w_mean.astype(w_dtype))
    w_cat = w_cat.at[:N, Mp:Mp + M].set(w_std.astype(w_dtype))
    b_cat = jnp.zeros((1, P), jnp.float32)
    b_cat = b_cat.at[:, :M].set(b_mean.astype(jnp.float32))
    b_cat = b_cat.at[:, Mp:Mp + M].set(b_std.astype(jnp.float32))

    # Batch tiling (grid over B); tile is a multiple of the 8-row sublane.
    tile_b = max(_SUBLANE, _round_up(min(tile_b, _round_up(B, _SUBLANE)),
                                     _SUBLANE))
    Bp = _round_up(B, tile_b)

    # Only materialize a padded/cast copy of x when actually needed.
    if Bp == B and Np == N and x.dtype == x_dtype:
        x_pad = x
    else:
        x_pad = jnp.zeros((Bp, Np), x_dtype).at[:B, :N].set(x.astype(x_dtype))

    grid = (Bp // tile_b,)
    out = pl.pallas_call(
        functools.partial(tanh_normal_layer_kernel, mp=Mp),
        out_shape=jax.ShapeDtypeStruct((Bp, P), jnp.float32),
        grid_spec=pltpu.PrefetchScalarGridSpec(
            num_scalar_prefetch=0,
            grid=grid,
            in_specs=[
                # x: tiled over the batch grid axis (double-buffered).
                pl.BlockSpec((tile_b, Np), lambda i: (i, 0)),
                # fused weights: constant index_map -> DMA'd once, resident.
                pl.BlockSpec((Np, P), lambda i: (0, 0)),
                # fused bias: constant index_map -> resident.
                pl.BlockSpec((1, P), lambda i: (0, 0)),
            ],
            out_specs=pl.BlockSpec((tile_b, P), lambda i: (i, 0)),
        ),
        compiler_params=pltpu.CompilerParams(
            dimension_semantics=("parallel",)),
    )(x_pad, w_cat, b_cat)

    mean = out[:B, :M]
    std = out[:B, Mp:Mp + M]
    return mean, std


def init_params(key, n, m):
    """Deterministic init mirroring TanhNormalLayer.__init__ semantics."""
    k1, k2, k3, k4 = jax.random.split(key, 4)
    # lin_mean: PyTorch default Linear init bounds.
    bound_w = 1.0 / np.sqrt(n)
    w_mean = jax.random.uniform(k1, (n, m), jnp.float32, -bound_w, bound_w)
    b_mean = jax.random.uniform(k2, (1, m), jnp.float32, -bound_w, bound_w)
    # lin_std: explicitly re-initialized to uniform(-0.001, 0.001).
    w_std = jax.random.uniform(k3, (n, m), jnp.float32, -0.001, 0.001)
    b_std = jax.random.uniform(k4, (1, m), jnp.float32, -0.001, 0.001)
    return w_mean, b_mean, w_std, b_std


if __name__ == "__main__":
    key = jax.random.PRNGKey(0)
    kx, kp = jax.random.split(key)

    B, N, M = 16, 32, 8  # batch, input features n, output features m
    x = jax.random.normal(kx, (B, N), jnp.float32)
    w_mean, b_mean, w_std, b_std = init_params(kp, N, M)

    # f32 path (tight tolerance).
    mean, std = tanh_normal_layer(x, w_mean, b_mean, w_std, b_std)
    jax.block_until_ready((mean, std))

    ref_mean = x @ w_mean + b_mean
    ref_std = jnp.exp(jnp.clip(x @ w_std + b_std, -20.0, 2.0))
    assert mean.shape == (B, M) and std.shape == (B, M)
    assert jnp.allclose(mean, ref_mean, atol=1e-5, rtol=1e-5)
    assert jnp.allclose(std, ref_std, atol=1e-5, rtol=1e-5)

    # bf16 weight/activation path (production memory-bound config); f32 acc.
    mean16, std16 = tanh_normal_layer(x, w_mean, b_mean, w_std, b_std,
                                      compute_dtype=jnp.bfloat16)
    jax.block_until_ready((mean16, std16))
    assert jnp.allclose(mean16, ref_mean, atol=2e-2, rtol=2e-2)
    assert jnp.allclose(std16, ref_std, atol=2e-2, rtol=2e-2)

    # TODO(synk): TanhNormal / Independent distribution objects (sampling,
    # log_prob, tanh squashing) are host-side wrappers around (mean, std) and
    # are not part of the kernel hot path.
    print("KERNEL_OK")
</pallas_src>

<mosaic_0001>
module attributes {stable_mosaic.version = 11 : i64} {
  func.func @tanh_normal_layer_kernel(%arg0: i32, %arg1: memref<16x128xf32, #tpu.memory_space<vmem>>, %arg2: memref<128x256xf32, #tpu.memory_space<vmem>>, %arg3: memref<1x256xf32, #tpu.memory_space<vmem>>, %arg4: memref<16x256xf32, #tpu.memory_space<vmem>>) attributes {dimension_semantics = [#tpu.dimension_semantics<parallel>], iteration_bounds = array<i64: 1>, scalar_prefetch = 0 : i64, scratch_operands = 0 : i64, tpu.core_type = #tpu.core_type<tc>, window_params = [{transform_indices = @transform_0, window_bounds = array<i64: 16, 128>}, {pipeline_mode = #tpu.pipeline_mode<synchronous>, transform_indices = @transform_1, window_bounds = array<i64: 128, 256>}, {pipeline_mode = #tpu.pipeline_mode<synchronous>, transform_indices = @transform_2, window_bounds = array<i64: 1, 256>}, {transform_indices = @transform_3, window_bounds = array<i64: 16, 256>}]} {
    %c0 = arith.constant 0 : index
    %c0_0 = arith.constant 0 : index
    %0 = vector.load %arg1[%c0, %c0_0] : memref<16x128xf32, #tpu.memory_space<vmem>>, vector<16x128xf32>
    %c0_1 = arith.constant 0 : index
    %c0_2 = arith.constant 0 : index
    %1 = vector.load %arg2[%c0_1, %c0_2] : memref<128x256xf32, #tpu.memory_space<vmem>>, vector<128x256xf32>
    %cst = arith.constant dense<0.000000e+00> : vector<16x256xf32>
    %2 = tpu.matmul %0, %1, %cst {dimension_numbers = #tpu.dot_dimension_numbers<[1], [0], [0], [1], [0, 0, 1, 1], [], []>} : vector<16x128xf32>, vector<128x256xf32>, vector<16x256xf32> -> vector<16x256xf32>
    %c0_3 = arith.constant 0 : index
    %c0_4 = arith.constant 0 : index
    %3 = vector.load %arg3[%c0_3, %c0_4] : memref<1x256xf32, #tpu.memory_space<vmem>>, vector<1x256xf32>
    %4 = vector.broadcast %3 : vector<1x256xf32> to vector<16x256xf32>
    %5 = arith.addf %2, %4 : vector<16x256xf32>
    %6 = tpu.iota {dimensions = array<i32: 1>} : vector<16x256xi32>
    %c128_i32 = arith.constant 128 : i32
    %7 = vector.broadcast %c128_i32 : i32 to vector<16x256xi32>
    %8 = arith.cmpi sge, %6, %7 : vector<16x256xi32>
    %cst_5 = arith.constant -2.000000e+01 : f32
    %cst_6 = arith.constant 2.000000e+00 : f32
    %9 = vector.broadcast %cst_5 : f32 to vector<16x256xf32>
    %10 = arith.maximumf %9, %5 : vector<16x256xf32>
    %11 = vector.broadcast %cst_6 : f32 to vector<16x256xf32>
    %12 = arith.minimumf %11, %10 : vector<16x256xf32>
    %13 = math.exp %12 : vector<16x256xf32>
    %14 = arith.select %8, %13, %5 : vector<16x256xi1>, vector<16x256xf32>
    %c0_7 = arith.constant 0 : index
    %c0_8 = arith.constant 0 : index
    %15 = vector.load %arg4[%c0_7, %c0_8] : memref<16x256xf32, #tpu.memory_space<vmem>>, vector<16x256xf32>
    tpu.vector_store %arg4[%c0_7, %c0_8], %14 {strides = array<i32>} : memref<16x256xf32, #tpu.memory_space<vmem>>, vector<16x256xf32>,
    return
  }
  func.func @transform_0(%arg0: i32) -> (i32, i32) {
    %c0_i32 = arith.constant 0 : i32
    %c0_i32_0 = arith.constant 0 : i32
    return %arg0, %c0_i32 : i32, i32
  }
  func.func @transform_1(%arg0: i32) -> (i32, i32) {
    %c0_i32 = arith.constant 0 : i32
    %c0_i32_0 = arith.constant 0 : i32
    %c0_i32_1 = arith.constant 0 : i32
    return %c0_i32, %c0_i32_0 : i32, i32
  }
  func.func @transform_2(%arg0: i32) -> (i32, i32) {
    %c0_i32 = arith.constant 0 : i32
    %c0_i32_0 = arith.constant 0 : i32
    %c0_i32_1 = arith.constant 0 : i32
    return %c0_i32, %c0_i32_0 : i32, i32
  }
  func.func @transform_3(%arg0: i32) -> (i32, i32) {
    %c0_i32 = arith.constant 0 : i32
    %c0_i32_0 = arith.constant 0 : i32
    return %arg0, %c0_i32 : i32, i32
  }
}

</mosaic_0001>

<llo_original>
// kernel: tpu_custom_call.1
$region0: #{tpu_custom_call.1}
  #allocation0 [shape = 'u32[]', space=smem, size = 0x4, offset = 0x4, fixed_abs, tag = 'smem constant byte address 0x4 - core index']
  #allocation1 [shape = 'u32[144,128]{1,0:T(1,128)}', space=vmem, size = 0x12000, scoped, tag = 'internal scratch']
  %s0 = inlined_call_operand.hbm [shape: f32[16,128], index: 0, kind: input, shape index: {}]
  %s1 = inlined_call_operand.hbm [shape: f32[128,256], index: 1, kind: input, shape index: {}]
  %s2 = inlined_call_operand.vmem [shape: f32[1,256], index: 2, kind: input, shape index: {}]
  %s3 = inlined_call_operand.hbm [shape: f32[16,256], index: 3, kind: output, shape index: {}]
  %s4 = sld [smem:[#allocation0]]
  $region30: #{tpu_custom_call.1} parent=0
    _
  %s6 = ssub.s32 1, %s4
  %s7 = scalar_select 0, %s6, %s4
  $region1: #{tpu_custom_call.1} parent=0
    #allocation2 [shape = 'u8[8192]{0}', space=vmem, size = 0x2000, scoped, tag = 'input window, operand 0, single buffered']
    #allocation3 [shape = 's32[1]{0}', space=sflag, size = 0x4, scoped, tag = 'scoped memory for tpu_custom_call.1']
    #allocation4 [shape = 's32[1]{0}', space=sflag, size = 0x4, scoped, tag = 'scoped memory for tpu_custom_call.1']
    #allocation5 [shape = 'u8[131072]{0}', space=vmem, size = 0x20000, scoped, tag = 'input window, operand 1, single buffered']
    #allocation6 [shape = 's32[1]{0}', space=sflag, size = 0x4, scoped, tag = 'scoped memory for tpu_custom_call.1']
    #allocation7 [shape = 'u8[16384]{0}', space=vmem, size = 0x4000, scoped, tag = 'output window, operand 0, single buffered']
    %8 = vsyncpa [#allocation3], 0
    %9 = vsyncpa [#allocation6], 0
    %10 = vsyncpa [#allocation4], 0
    // Predicated region
    $region2: #{tpu_custom_call.1} parent=1 // pred_check
      _
    $region3: #{tpu_custom_call.1} parent=1 // pred_check_branch
      %12 = sbr.rel (0) target = $region5
    $region4: #{tpu_custom_call.1} parent=1 // pred_region
      %s14 = ssub.s32 256, 256
      %15 = vsyncadd [#allocation3], %s14
      %s16 = sshll.u32 [#allocation2], 4
      %s17 = int_to_ptr.vmem [resolvable:$true] %s16
      %22 = dma.hbm_to_vmem [thread:$0]  %s0, 256, %s17, [#allocation3], 128, 128, 8
    $region5: #{tpu_custom_call.1} parent=1 // pred_fallthru
      _
    // Predicated region
    $region6: #{tpu_custom_call.1} parent=1 // pred_check
      _
    $region7: #{tpu_custom_call.1} parent=1 // pred_check_branch
      %24 = sbr.rel (0) target = $region9
    $region8: #{tpu_custom_call.1} parent=1 // pred_region
      %s26 = ssub.s32 4096, 4096
      %27 = vsyncadd [#allocation6], %s26
      %s28 = sshll.u32 [#allocation5], 4
      %s29 = int_to_ptr.vmem [resolvable:$true] %s28
      %34 = dma.hbm_to_vmem [thread:$0]  %s1, 4096, %s29, [#allocation6], 256, 256, 16
    $region9: #{tpu_custom_call.1} parent=1 // pred_fallthru
      _
    // Predicated region
    $region10: #{tpu_custom_call.1} parent=1 // pred_check
      _
    $region11: #{tpu_custom_call.1} parent=1 // pred_check_branch
      %36 = sbr.rel (0) target = $region13
    $region12: #{tpu_custom_call.1} parent=1 // pred_region
      _
    $region13: #{tpu_custom_call.1} parent=1 // pred_fallthru
      _
    // Predicated region
    $region14: #{tpu_custom_call.1} parent=1 // pred_check
      _
    $region15: #{tpu_custom_call.1} parent=1 // pred_check_branch
      %38 = sbr.rel (0) target = $region17
    $region16: #{tpu_custom_call.1} parent=1 // pred_region
      %39 = dma.done [#allocation3], 256
    $region17: #{tpu_custom_call.1} parent=1 // pred_fallthru
      _
    // Predicated region
    $region18: #{tpu_custom_call.1} parent=1 // pred_check
      _
    $region19: #{tpu_custom_call.1} parent=1 // pred_check_branch
      %41 = sbr.rel (0) target = $region21
    $region20: #{tpu_custom_call.1} parent=1 // pred_region
      %42 = dma.done [#allocation6], 4096
    $region21: #{tpu_custom_call.1} parent=1 // pred_fallthru
      _
    %v43 = vld [vmem:[#allocation2] sm:$0xff]
    %v44 = vld [vmem:[#allocation2 + $0x8] sm:$0xff]
    %v45 = vld [vmem:[#allocation5] sm:$0xff]
    %v46 = vld [vmem:[#allocation5 + $0x8] sm:$0xff]
    %v47 = vld [vmem:[#allocation5 + $0x10] sm:$0xff]
    %v48 = vld [vmem:[#allocation5 + $0x18] sm:$0xff]
    %v49 = vld [vmem:[#allocation5 + $0x20] sm:$0xff]
    %v50 = vld [vmem:[#allocation5 + $0x28] sm:$0xff]
    %v51 = vld [vmem:[#allocation5 + $0x30] sm:$0xff]
    %v52 = vld [vmem:[#allocation5 + $0x38] sm:$0xff]
    %v53 = vld [vmem:[#allocation5 + $0x40] sm:$0xff]
    %v54 = vld [vmem:[#allocation5 + $0x48] sm:$0xff]
    %v55 = vld [vmem:[#allocation5 + $0x50] sm:$0xff]
    %v56 = vld [vmem:[#allocation5 + $0x58] sm:$0xff]
    %v57 = vld [vmem:[#allocation5 + $0x60] sm:$0xff]
    %v58 = vld [vmem:[#allocation5 + $0x68] sm:$0xff]
    %v59 = vld [vmem:[#allocation5 + $0x70] sm:$0xff]
    %v60 = vld [vmem:[#allocation5 + $0x78] sm:$0xff]
    %v61 = vld [vmem:[#allocation5 + $0x80] sm:$0xff]
    %v62 = vld [vmem:[#allocation5 + $0x88] sm:$0xff]
    %v63 = vld [vmem:[#allocation5 + $0x90] sm:$0xff]
    %v64 = vld [vmem:[#allocation5 + $0x98] sm:$0xff]
    %v65 = vld [vmem:[#allocation5 + $0xa0] sm:$0xff]
    %v66 = vld [vmem:[#allocation5 + $0xa8] sm:$0xff]
    %v67 = vld [vmem:[#allocation5 + $0xb0] sm:$0xff]
    %v68 = vld [vmem:[#allocation5 + $0xb8] sm:$0xff]
    %v69 = vld [vmem:[#allocation5 + $0xc0] sm:$0xff]
    %v70 = vld [vmem:[#allocation5 + $0xc8] sm:$0xff]
    %v71 = vld [vmem:[#allocation5 + $0xd0] sm:$0xff]
    %v72 = vld [vmem:[#allocation5 + $0xd8] sm:$0xff]
    %v73 = vld [vmem:[#allocation5 + $0xe0] sm:$0xff]
    %v74 = vld [vmem:[#allocation5 + $0xe8] sm:$0xff]
    %v75 = vld [vmem:[#allocation5 + $0xf0] sm:$0xff]
    %v76 = vld [vmem:[#allocation5 + $0xf8] sm:$0xff]
    %v77 = vld [vmem:[%s2] sm:$0x3]
    %v79 = vlaneseq
    %v80 = vshrl.u32 %v79, 7
    %v81 = vsub.s32 0, %v80
    %v82 = vrot.slane %v77, %v81
    %v83 = vlaneseq
    %v84 = vshrl.u32 %v83, 7
    %v85 = vsub.s32 1, %v84
    %v86 = vrot.slane %v77, %v85
    %89 = vmatprep.subr.mxu0 %v46
    %90 = vmatpush1.msra.mxu0 %v45
    %91 = vmatprep.subr.mxu0 %v48
    %92 = vmatpush1.msra.mxu0 %v47
    %93 = vmatprep.subr.mxu0 %v50
    %94 = vmatpush1.msra.mxu0 %v49
    %95 = vmatprep.subr.mxu0 %v52
    %96 = vmatpush1.msra.mxu0 %v51
    %97 = vmatprep.subr.mxu0 %v54
    %98 = vmatpush1.msra.mxu0 %v53
    %99 = vmatprep.subr.mxu0 %v56
    %100 = vmatpush1.msra.mxu0 %v55
    %101 = vmatprep.subr.mxu0 %v58
    %102 = vmatpush1.msra.mxu0 %v57
    %103 = vmatprep.subr.mxu0 %v60
    %104 = vmatpush1.msra.mxu0 %v59
    %105 = vmatprep.subr.mxu0 %v62
    %106 = vmatpush1.msra.mxu0 %v61
    %107 = vmatprep.subr.mxu0 %v64
    %108 = vmatpush1.msra.mxu0 %v63
    %109 = vmatprep.subr.mxu0 %v66
    %110 = vmatpush1.msra.mxu0 %v65
    %111 = vmatprep.subr.mxu0 %v68
    %112 = vmatpush1.msra.mxu0 %v67
    %113 = vmatprep.subr.mxu0 %v70
    %114 = vmatpush1.msra.mxu0 %v69
    %115 = vmatprep.subr.mxu0 %v72
    %116 = vmatpush1.msra.mxu0 %v71
    %117 = vmatprep.subr.mxu0 %v74
    %118 = vmatpush1.msra.mxu0 %v73
    %119 = vmatprep.subr.mxu0 %v76
    %120 = vmatpush1.msra.mxu0 %v75
    %121 = vmatprep.subr.mxu0 0.0
    %122 = vmatpush1.msra.mxu0 0.0
    %123 = vmatprep.subr.mxu0 0.0
    %124 = vmatpush1.msra.mxu0 0.0
    %125 = vmatprep.subr.mxu0 0.0
    %126 = vmatpush1.msra.mxu0 0.0
    %127 = vmatprep.subr.mxu0 0.0
    %128 = vmatpush1.msra.mxu0 0.0
    %129 = vmatprep.subr.mxu0 0.0
    %130 = vmatpush1.msra.mxu0 0.0
    %131 = vmatprep.subr.mxu0 0.0
    %132 = vmatpush1.msra.mxu0 0.0
    %133 = vmatprep.subr.mxu0 0.0
    %134 = vmatpush1.msra.mxu0 0.0
    %135 = vmatprep.subr.mxu0 0.0
    %136 = vmatpush1.msra.mxu0 0.0
    %137 = vmatprep.subr.mxu0 0.0
    %138 = vmatpush1.msra.mxu0 0.0
    %139 = vmatprep.subr.mxu0 0.0
    %140 = vmatpush1.msra.mxu0 0.0
    %141 = vmatprep.subr.mxu0 0.0
    %142 = vmatpush1.msra.mxu0 0.0
    %143 = vmatprep.subr.mxu0 0.0
    %144 = vmatpush1.msra.mxu0 0.0
    %145 = vmatprep.subr.mxu0 0.0
    %146 = vmatpush1.msra.mxu0 0.0
    %147 = vmatprep.subr.mxu0 0.0
    %148 = vmatpush1.msra.mxu0 0.0
    %149 = vmatprep.subr.mxu0 0.0
    %150 = vmatpush1.msra.mxu0 0.0
    %151 = vmatprep.subr.mxu0 0.0
    %152 = vmatpush1.msra.mxu0 0.0
    %153 = vmatprep.mubr.f32.mxu0 0.0
    %154 = vmatmul.mubr.f32.gmra.mrb[0].mxu0 %v43
    %v155 = vpop.f32.mrb[0].mxu0
    %v156 = vadd.f32 %v82, %v155
    %v157 = vpop.f32.mrb[0].mxu0
    %v158 = vadd.f32 %v86, %v157
    %159 = vmatprep.mubr.f32.mxu0 0.0
    %160 = vmatmul.mubr.f32.gmra.mrb[0].mxu0 %v44
    %v161 = vpop.f32.mrb[0].mxu0
    %v162 = vadd.f32 %v82, %v161
    %v163 = vpop.f32.mrb[0].mxu0
    %v164 = vadd.f32 %v86, %v163
    %165 = vdwg.mxu0
    %v166 = vlaneseq
    %v167 = vand.u32 %v166, 127
    %v168 = vadd.s32 %v167, 128
    %vm169 = vcmp.ge.s32.totalorder %v167, 128
    %vm170 = vcmp.ge.s32.totalorder %v168, 128
    %v171 = vmax.f32 %v156, -20.0
    %v172 = vmax.f32 %v158, -20.0
    %v173 = vmax.f32 %v162, -20.0
    %v174 = vmax.f32 %v164, -20.0
    %v175 = vmin.f32 %v171, 2.0
    %v176 = vmin.f32 %v172, 2.0
    %v177 = vmin.f32 %v173, 2.0
    %v178 = vmin.f32 %v174, 2.0
    %v179 = vmul.f32 %v175, 1.442695
    %v180 = vpow.pop %v179
    %v181 = vmul.f32 %v176, 1.442695
    %v182 = vpow.pop %v181
    %v183 = vmul.f32 %v177, 1.442695
    %v184 = vpow.pop %v183
    %v185 = vmul.f32 %v178, 1.442695
    %v186 = vpow.pop %v185
    %v187 = vsel %vm169, %v180, %v156
    %v188 = vsel %vm170, %v182, %v158
    %v189 = vsel %vm169, %v184, %v162
    %v190 = vsel %vm170, %v186, %v164
    %191 = vst [vmem:[#allocation7] sm:$0xff] %v187
    %192 = vst [vmem:[#allocation7 + $0x8] sm:$0xff] %v188
    %193 = vst [vmem:[#allocation7 + $0x10] sm:$0xff] %v189
    %194 = vst [vmem:[#allocation7 + $0x18] sm:$0xff] %v190
    // Predicated region
    $region22: #{tpu_custom_call.1} parent=1 // pred_check
      _
    $region23: #{tpu_custom_call.1} parent=1 // pred_check_branch
      %196 = sbr.rel (0) target = $region25
    $region24: #{tpu_custom_call.1} parent=1 // pred_region
      %s198 = ssub.s32 512, 512
      %199 = vsyncadd [#allocation4], %s198
      %s200 = sshll.u32 [#allocation7], 4
      %s201 = int_to_ptr.vmem [resolvable:$true] %s200
      %206 = dma.vmem_to_hbm [thread:$0]  %s201, 512, %s3, [#allocation4], 256, 256, 16
    $region25: #{tpu_custom_call.1} parent=1 // pred_fallthru
      _
    // Predicated region
    $region26: #{tpu_custom_call.1} parent=1 // pred_check
      _
    $region27: #{tpu_custom_call.1} parent=1 // pred_check_branch
      %208 = sbr.rel (0) target = $region29
    $region28: #{tpu_custom_call.1} parent=1 // pred_region
      %209 = dma.done [#allocation4], 512
    $region29: #{tpu_custom_call.1} parent=1 // pred_fallthru
      _
    %210 = vsyncpa [#allocation3], 1
    %211 = vsyncpa [#allocation6], 1
    %212 = vsyncpa [#allocation4], 1

</llo_original>
